<compile_context>
chip_gen: v6e
topology: v6e:2x2x1
jax: 0.10.0
libtpu: 0.0.40
codegen_flags: <defaults>
</compile_context>

<pallas_src>
import jax
import jax.numpy as jnp
from jax.experimental import pallas as pl
from jax.experimental.pallas import tpu as pltpu


def _gate_kernel(x_ref, v_ref, o_ref):
    # x_ref: (TR, TL) activation tile; v_ref: (TR, 1) per-row gate value.
    # Lane-broadcast multiply on the VPU.
    o_ref[...] = x_ref[...] * v_ref[...]


def _pick_tile(dim, align, max_tile):
    """Largest tile <= max_tile that is either the full dim or `align`-aligned."""
    if dim <= max_tile:
        return dim
    return max((max_tile // align) * align, align)


def deterministic_gate(
    x_nchw,
    values_c,
    *,
    force_pallas=False,
    donate_x=False,
    max_row_tile=256,
    max_lane_tile=2048,
):
    """Equivalent of DeterministicGate.forward.

    x_nchw:   (N, C, H, W) float32 activations.
    values_c: (C,) float32 per-channel gate values (broadcast like (1,C,1,1)).
    Returns (x * values, zero_scalar).
    """
    N, C, H, W = x_nchw.shape

    # Tiny-size path: let XLA fuse the multiply into producer/consumer.
    if not force_pallas and x_nchw.size < (1 << 20):
        gated = x_nchw * values_c.astype(x_nchw.dtype).reshape(1, C, 1, 1)
        return gated, jnp.float32(0.0)

    # Flatten to a lane-dense 2-D slab: rows = (n, c) pairs, lanes = H*W.
    R, L = N * C, H * W
    x2d = x_nchw.reshape(R, L)
    # Per-row gate column: row r = (n, c) maps to values[c].
    v_col = jnp.broadcast_to(
        values_c.astype(x2d.dtype)[None, :], (N, C)
    ).reshape(R, 1)

    # Tile sizing: <= ~2 MiB per f32 buffer (256 * 2048 * 4B).  Row tiles are
    # sublane (8) aligned, lane tiles are lane (128) aligned, unless they span
    # the full dimension (which Pallas also accepts).
    TR = _pick_tile(R, 8, max_row_tile)
    TL = _pick_tile(L, 128, max_lane_tile)
    grid = (pl.cdiv(R, TR), pl.cdiv(L, TL))

    out2d = pl.pallas_call(
        _gate_kernel,
        out_shape=jax.ShapeDtypeStruct((R, L), x2d.dtype),
        grid_spec=pl.GridSpec(
            grid=grid,
            in_specs=[
                pl.BlockSpec((TR, TL), lambda i, j: (i, j)),
                pl.BlockSpec((TR, 1), lambda i, j: (i, 0)),
            ],
            out_specs=pl.BlockSpec((TR, TL), lambda i, j: (i, j)),
        ),
        compiler_params=pltpu.CompilerParams(
            dimension_semantics=("parallel", "parallel"),
        ),
        input_output_aliases={0: 0} if donate_x else {},
    )(x2d, v_col)

    gated = out2d.reshape(N, C, H, W)
    zero = jnp.float32(0.0)  # matches self.zero_tensor
    return gated, zero


if __name__ == "__main__":
    key = jax.random.PRNGKey(0)
    kx, kv = jax.random.split(key)

    N, C, H, W = 2, 4, 16, 16
    x = jax.random.normal(kx, (N, C, H, W), dtype=jnp.float32)
    values = jax.random.uniform(kv, (C,), dtype=jnp.float32)

    ref = x * values.reshape(1, C, 1, 1)

    # 1) Pallas path at the toy size (force_pallas=True; production callers at
    #    this size would take the fused-XLA fallback).  Single-tile grid.
    gated, zero = deterministic_gate(x, values, force_pallas=True)
    jax.block_until_ready(gated)
    jax.block_until_ready(zero)
    assert jnp.allclose(gated, ref, atol=1e-6), "mismatch vs reference (1 tile)"
    assert zero == 0.0

    # 2) Same computation with small tile caps to exercise a multi-tile grid
    #    (2 lane tiles of 128) and the tiled index_maps.
    gated2, zero2 = deterministic_gate(
        x, values, force_pallas=True, max_row_tile=8, max_lane_tile=128
    )
    jax.block_until_ready(gated2)
    assert jnp.allclose(gated2, ref, atol=1e-6), "mismatch vs reference (tiled)"
    assert zero2 == 0.0

    print("KERNEL_OK")
</pallas_src>

<mosaic_0001>
module attributes {stable_mosaic.version = 11 : i64} {
  func.func @_gate_kernel(%arg0: i32, %arg1: i32, %arg2: memref<8x256xf32, #tpu.memory_space<vmem>>, %arg3: memref<8x1xf32, #tpu.memory_space<vmem>>, %arg4: memref<8x256xf32, #tpu.memory_space<vmem>>) attributes {dimension_semantics = [#tpu.dimension_semantics<parallel>, #tpu.dimension_semantics<parallel>], iteration_bounds = array<i64: 1, 1>, scalar_prefetch = 0 : i64, scratch_operands = 0 : i64, tpu.core_type = #tpu.core_type<tc>, window_params = [{transform_indices = @transform_0, window_bounds = array<i64: 8, 256>}, {transform_indices = @transform_1, window_bounds = array<i64: 8, 1>}, {transform_indices = @transform_2, window_bounds = array<i64: 8, 256>}]} {
    %c0 = arith.constant 0 : index
    %c0_0 = arith.constant 0 : index
    %0 = vector.load %arg2[%c0, %c0_0] : memref<8x256xf32, #tpu.memory_space<vmem>>, vector<8x256xf32>
    %c0_1 = arith.constant 0 : index
    %c0_2 = arith.constant 0 : index
    %1 = vector.load %arg3[%c0_1, %c0_2] : memref<8x1xf32, #tpu.memory_space<vmem>>, vector<8x1xf32>
    %2 = vector.broadcast %1 : vector<8x1xf32> to vector<8x256xf32>
    %3 = arith.mulf %0, %2 : vector<8x256xf32>
    %c0_3 = arith.constant 0 : index
    %c0_4 = arith.constant 0 : index
    %4 = vector.load %arg4[%c0_3, %c0_4] : memref<8x256xf32, #tpu.memory_space<vmem>>, vector<8x256xf32>
    tpu.vector_store %arg4[%c0_3, %c0_4], %3 {strides = array<i32>} : memref<8x256xf32, #tpu.memory_space<vmem>>, vector<8x256xf32>,
    return
  }
  func.func @transform_0(%arg0: i32, %arg1: i32) -> (i32, i32) {
    %c0_i32 = arith.constant 0 : i32
    return %arg0, %arg1 : i32, i32
  }
  func.func @transform_1(%arg0: i32, %arg1: i32) -> (i32, i32) {
    %c0_i32 = arith.constant 0 : i32
    %c0_i32_0 = arith.constant 0 : i32
    return %arg0, %c0_i32 : i32, i32
  }
  func.func @transform_2(%arg0: i32, %arg1: i32) -> (i32, i32) {
    %c0_i32 = arith.constant 0 : i32
    return %arg0, %arg1 : i32, i32
  }
}

</mosaic_0001>

<llo_original>
// kernel: tpu_custom_call.1
$region0: #{tpu_custom_call.1}
  #allocation0 [shape = 'u32[]', space=smem, size = 0x4, offset = 0x4, fixed_abs, tag = 'smem constant byte address 0x4 - core index']
  #allocation1 [shape = 'u32[144,128]{1,0:T(1,128)}', space=vmem, size = 0x12000, scoped, tag = 'internal scratch']
  %s0 = inlined_call_operand.hbm [shape: f32[8,256], index: 0, kind: input, shape index: {}]
  %s1 = inlined_call_operand.vmem [shape: f32[8,1], index: 1, kind: input, shape index: {}]
  %s2 = inlined_call_operand.hbm [shape: f32[8,256], index: 2, kind: output, shape index: {}]
  %s3 = sld [smem:[#allocation0]]
  $region22: #{tpu_custom_call.1} parent=0
    _
  %s5 = ssub.s32 1, %s3
  %s6 = scalar_select 0, %s5, %s3
  $region1: #{tpu_custom_call.1} parent=0
    #allocation2 [shape = 'u8[8192]{0}', space=vmem, size = 0x2000, scoped, tag = 'input window, operand 0, single buffered']
    #allocation3 [shape = 's32[1]{0}', space=sflag, size = 0x4, scoped, tag = 'scoped memory for tpu_custom_call.1']
    #allocation4 [shape = 's32[1]{0}', space=sflag, size = 0x4, scoped, tag = 'scoped memory for tpu_custom_call.1']
    #allocation5 [shape = 'u8[8192]{0}', space=vmem, size = 0x2000, scoped, tag = 'output window, operand 0, single buffered']
    %7 = vsyncpa [#allocation3], 0
    %8 = vsyncpa [#allocation4], 0
    // Predicated region
    $region2: #{tpu_custom_call.1} parent=1 // pred_check
      _
    $region3: #{tpu_custom_call.1} parent=1 // pred_check_branch
      %10 = sbr.rel (0) target = $region5
    $region4: #{tpu_custom_call.1} parent=1 // pred_region
      %s12 = ssub.s32 256, 256
      %13 = vsyncadd [#allocation3], %s12
      %s15 = sshll.u32 [#allocation2], 4
      %s16 = int_to_ptr.vmem [resolvable:$true] %s15
      %18 = dma.hbm_to_vmem [thread:$0]  %s0, 256, %s16, [#allocation3]
    $region5: #{tpu_custom_call.1} parent=1 // pred_fallthru
      _
    // Predicated region
    $region6: #{tpu_custom_call.1} parent=1 // pred_check
      _
    $region7: #{tpu_custom_call.1} parent=1 // pred_check_branch
      %20 = sbr.rel (0) target = $region9
    $region8: #{tpu_custom_call.1} parent=1 // pred_region
      _
    $region9: #{tpu_custom_call.1} parent=1 // pred_fallthru
      _
    // Predicated region
    $region10: #{tpu_custom_call.1} parent=1 // pred_check
      _
    $region11: #{tpu_custom_call.1} parent=1 // pred_check_branch
      %22 = sbr.rel (0) target = $region13
    $region12: #{tpu_custom_call.1} parent=1 // pred_region
      %23 = dma.done [#allocation3], 256
    $region13: #{tpu_custom_call.1} parent=1 // pred_fallthru
      _
    %v24 = vld [vmem:[#allocation2] sm:$0xff]
    %v25 = vld [vmem:[#allocation2 + $0x8] sm:$0xff]
    %v26 = vld [vmem:[%s1] sm:$0xff]
    %28 = vset.pattern.permute.xlu0 0
    %29 = vperm.xlu0 %28, %v26
    %v30 = vpop.permute.xlu0 %29
    %v32 = vmul.f32 %v24, %v30
    %v33 = vmul.f32 %v25, %v30
    %34 = vst [vmem:[#allocation5] sm:$0xff] %v32
    %35 = vst [vmem:[#allocation5 + $0x8] sm:$0xff] %v33
    // Predicated region
    $region14: #{tpu_custom_call.1} parent=1 // pred_check
      _
    $region15: #{tpu_custom_call.1} parent=1 // pred_check_branch
      %37 = sbr.rel (0) target = $region17
    $region16: #{tpu_custom_call.1} parent=1 // pred_region
      %s39 = ssub.s32 256, 256
      %40 = vsyncadd [#allocation4], %s39
      %s42 = sshll.u32 [#allocation5], 4
      %s43 = int_to_ptr.vmem [resolvable:$true] %s42
      %45 = dma.vmem_to_hbm [thread:$0]  %s43, 256, %s2, [#allocation4]
    $region17: #{tpu_custom_call.1} parent=1 // pred_fallthru
      _
    // Predicated region
    $region18: #{tpu_custom_call.1} parent=1 // pred_check
      _
    $region19: #{tpu_custom_call.1} parent=1 // pred_check_branch
      %47 = sbr.rel (0) target = $region21
    $region20: #{tpu_custom_call.1} parent=1 // pred_region
      %48 = dma.done [#allocation4], 256
    $region21: #{tpu_custom_call.1} parent=1 // pred_fallthru
      _
    %49 = vsyncpa [#allocation3], 1
    %50 = vsyncpa [#allocation4], 1

</llo_original>
